<compile_context>
chip_gen: v6e
topology: v6e:2x2x1
jax: 0.10.0
libtpu: 0.0.40
codegen_flags: <defaults>
</compile_context>

<pallas_src>
import jax
import jax.numpy as jnp
from jax.experimental import pallas as pl
from jax.experimental.pallas import tpu as pltpu

_LANE = 128


def classifier_kernel(a_ref, w1_ref, b1_ref, w2_ref, b2_ref, wc_ref, bc_ref,
                      out_ref):
    # A travels as bf16 (exact for a 0/1 adjacency); all math is f32 in VMEM.
    a = a_ref[...].astype(jnp.float32)               # (G, N, N)  A[g, dst, src]
    G, N, _ = a.shape
    H = w2_ref.shape[1]

    indeg = jnp.sum(a, axis=2, keepdims=True)        # (G, N, 1)  in-degree(dst)
    outdeg = jnp.sum(a, axis=1, keepdims=True)       # (G, 1, N)  out-degree(src)

    # DGL clamps degrees to min 1 before the symmetric normalization.
    norm_dst = jax.lax.rsqrt(jnp.maximum(indeg, 1.0))     # (G, N, 1)
    norm_src = jax.lax.rsqrt(jnp.maximum(outdeg, 1.0))    # (G, 1, N)

    # Fold the src-side normalization into A once (shared by both layers);
    # the dst-side normalization is a cheap per-row scale of the result,
    # so the fully normalized A is never materialized per layer.
    a_s = a * norm_src                               # (G, N, N)

    # ---- GraphConv 1 (in_dim = 1), re-associated as (A_s @ h0) first: a
    # per-graph (N,N)@(N,1) matvec, then the 1->H weight is a VPU outer
    # product (no wide per-graph MXU push for layer 1).
    agg1 = jnp.einsum('gds,gsk->gdk', a_s, indeg,
                      preferred_element_type=jnp.float32)          # (G, N, 1)
    h1 = jnp.maximum((norm_dst * agg1) * w1_ref[...] + b1_ref[...], 0.0)  # (G,N,H)

    # ---- GraphConv 2: per-graph aggregation (batched matmul), then one
    # stacked (G*N, H) @ (H, H) MXU matmul with the shared weight.
    agg2 = jnp.einsum('gds,gsh->gdh', a_s, h1,
                      preferred_element_type=jnp.float32)          # (G, N, H)
    agg2 = norm_dst * agg2
    y2 = jnp.dot(agg2.reshape(G * N, H), w2_ref[...],
                 preferred_element_type=jnp.float32)               # (G*N, H)
    h2 = jnp.maximum(y2 + b2_ref[...], 0.0).reshape(G, N, H)

    # ---- mean_nodes + classifier.  wc/bc are zero-padded to 128 output
    # lanes by the wrapper, so this is an unmasked lane-dense store.
    hg = jnp.mean(h2, axis=1)                                      # (G, H)
    out_ref[...] = (jnp.dot(hg, wc_ref[...],
                            preferred_element_type=jnp.float32)
                    + bc_ref[...])                                 # (G, 128)


def _graphs_per_step(B, N, target_rows=2048):
    """Pick G graphs per grid step so G*N ~= target_rows stacked rows.

    Large G amortizes the ~0.35 us/step pipeline overhead and makes the
    A-block DMAs long and contiguous.  G must be a multiple of 8 (legal
    sublane block for the (G, 128) output tile) unless it covers the batch.
    """
    g = max(1, target_rows // N)
    if g >= B:
        return B                        # single grid step, block == full batch
    g = max(8, (g // 8) * 8)
    if pl.cdiv(B, g) % 2 == 1:
        # Best effort: an even number of grid steps balances the two
        # TensorCores on v7x under dimension_semantics=("parallel",).
        for cand in range(g, max(8, g // 2) - 1, -8):
            if pl.cdiv(B, cand) % 2 == 0:
                return cand
    return g


def classifier_forward(A, w1, b1, w2, b2, wc, bc, target_rows=2048):
    B, N, _ = A.shape
    H = w1.shape[1]
    C = wc.shape[1]
    C_pad = _LANE

    # A dominates HBM traffic: ship it as bf16 (0/1 entries are exact).
    # Callers should build A in bf16 so this cast is a no-op.
    A = A.astype(jnp.bfloat16)
    w1 = w1.astype(jnp.float32).reshape(1, H)
    b1 = b1.astype(jnp.float32).reshape(1, H)
    w2 = w2.astype(jnp.float32)
    b2 = b2.astype(jnp.float32).reshape(1, H)
    # Zero-pad the classifier to a lane-dense 128-wide output (sliced below).
    wc_p = jnp.zeros((H, C_pad), jnp.float32).at[:, :C].set(wc.astype(jnp.float32))
    bc_p = jnp.zeros((1, C_pad), jnp.float32).at[:, :C].set(
        bc.astype(jnp.float32).reshape(1, C))

    G = _graphs_per_step(B, N, target_rows)
    steps = pl.cdiv(B, G)

    def full(arr):
        return pl.BlockSpec(arr.shape, lambda b: (0,) * arr.ndim)

    grid_spec = pltpu.PrefetchScalarGridSpec(
        num_scalar_prefetch=0,
        grid=(steps,),
        in_specs=[
            # Ragged last block: OOB graph rows read unspecified data (kept
            # isolated per-graph) and their output rows are write-masked;
            # the wrapper slices the first B rows.  No jnp.pad copy of A.
            pl.BlockSpec((G, N, N), lambda b: (b, 0, 0)),
            full(w1), full(b1), full(w2), full(b2), full(wc_p), full(bc_p),
        ],
        out_specs=pl.BlockSpec((G, C_pad), lambda b: (b, 0)),
    )

    flops = B * (2 * N * N            # conv1 matvec aggregation
                 + 3 * N * H          # conv1 outer product + bias + relu
                 + 2 * N * N * H      # conv2 aggregation
                 + 2 * N * H * H      # conv2 dense weight
                 + 2 * H * C_pad)     # classifier
    bytes_accessed = (2 * A.size                      # bf16 adjacency stream
                      + 4 * (w1.size + b1.size + w2.size + b2.size
                             + wc_p.size + bc_p.size)
                      + 4 * B * C_pad)

    out = pl.pallas_call(
        classifier_kernel,
        out_shape=jax.ShapeDtypeStruct((B, C_pad), jnp.float32),
        grid_spec=grid_spec,
        compiler_params=pltpu.CompilerParams(
            dimension_semantics=("parallel",),
            # Explicit scoped-VMEM limit: v5e defaults to 16 MiB which is
            # tight for the G=128 working set; 48 MiB still leaves headroom
            # under v7x's 64 MiB physical VMEM.
            vmem_limit_bytes=48 * 1024 * 1024,
        ),
        cost_estimate=pl.CostEstimate(flops=int(flops),
                                      transcendentals=int(2 * B * N),
                                      bytes_accessed=int(bytes_accessed)),
    )(A, w1, b1, w2, b2, wc_p, bc_p)
    return out[:B, :C]


def classifier_reference(A, w1, b1, w2, b2, wc, bc):
    """Pure-JAX reference of the same forward pass (for verification)."""
    def one_graph(a):
        indeg = jnp.sum(a, axis=1, keepdims=True)
        outdeg = jnp.sum(a, axis=0, keepdims=True)
        a_norm = (a * jax.lax.rsqrt(jnp.maximum(indeg, 1.0))
                    * jax.lax.rsqrt(jnp.maximum(outdeg, 1.0)))
        h = indeg
        h = jnp.maximum(a_norm @ h @ w1 + b1, 0.0)
        h = jnp.maximum(a_norm @ h @ w2 + b2, 0.0)
        hg = jnp.mean(h, axis=0, keepdims=True)
        return (hg @ wc + bc)[0]
    return jax.vmap(one_graph)(A)


if __name__ == "__main__":
    N = 16                   # nodes per graph
    in_dim, hidden_dim, n_classes = 1, 32, 4

    key = jax.random.PRNGKey(0)
    k_adj, k_adj2, k_w1, k_b1, k_w2, k_b2, k_wc, k_bc = jax.random.split(key, 8)

    # Deterministic synthetic parameters (GraphConv weight: (in, out)).
    w1 = 0.5 * jax.random.normal(k_w1, (in_dim, hidden_dim), jnp.float32)
    b1 = 0.1 * jax.random.normal(k_b1, (1, hidden_dim), jnp.float32)
    w2 = 0.5 * jax.random.normal(k_w2, (hidden_dim, hidden_dim), jnp.float32)
    b2 = 0.1 * jax.random.normal(k_b2, (1, hidden_dim), jnp.float32)
    wc = 0.5 * jax.random.normal(k_wc, (hidden_dim, n_classes), jnp.float32)
    bc = 0.1 * jax.random.normal(k_bc, (1, n_classes), jnp.float32)

    # Test 1: tiny batch -> single grid step with block == full batch dim.
    B1 = 2
    A1 = (jax.random.uniform(k_adj, (B1, N, N)) < 0.3).astype(jnp.bfloat16)
    out1 = jax.block_until_ready(classifier_forward(A1, w1, b1, w2, b2, wc, bc))
    ref1 = classifier_reference(A1.astype(jnp.float32), w1, b1, w2, b2, wc, bc)
    assert out1.shape == (B1, n_classes)
    assert jnp.allclose(out1, ref1, atol=1e-4, rtol=1e-4), (out1, ref1)

    # Test 2: multi-step grid with a ragged last block (B=40 with a forced
    # small G=16 -> 3 steps; rows 40..47 of the last block are out of range
    # and are masked on write / sliced off).
    B2 = 40
    A2 = (jax.random.uniform(k_adj2, (B2, N, N)) < 0.3).astype(jnp.bfloat16)
    out2 = jax.block_until_ready(
        classifier_forward(A2, w1, b1, w2, b2, wc, bc, target_rows=256))
    ref2 = classifier_reference(A2.astype(jnp.float32), w1, b1, w2, b2, wc, bc)
    assert out2.shape == (B2, n_classes)
    assert jnp.allclose(out2, ref2, atol=1e-4, rtol=1e-4), (out2, ref2)

    print("KERNEL_OK")
</pallas_src>

<mosaic_0001>
module attributes {stable_mosaic.version = 11 : i64} {
  func.func @classifier_kernel(%arg0: i32, %arg1: memref<2x16x16xbf16, #tpu.memory_space<vmem>>, %arg2: memref<1x32xf32, #tpu.memory_space<vmem>>, %arg3: memref<1x32xf32, #tpu.memory_space<vmem>>, %arg4: memref<32x32xf32, #tpu.memory_space<vmem>>, %arg5: memref<1x32xf32, #tpu.memory_space<vmem>>, %arg6: memref<32x128xf32, #tpu.memory_space<vmem>>, %arg7: memref<1x128xf32, #tpu.memory_space<vmem>>, %arg8: memref<2x128xf32, #tpu.memory_space<vmem>>) attributes {dimension_semantics = [#tpu.dimension_semantics<parallel>], iteration_bounds = array<i64: 1>, scalar_prefetch = 0 : i64, scratch_operands = 0 : i64, tpu.core_type = #tpu.core_type<tc>, window_params = [{transform_indices = @transform_0, window_bounds = array<i64: 2, 16, 16>}, {pipeline_mode = #tpu.pipeline_mode<synchronous>, transform_indices = @transform_1, window_bounds = array<i64: 1, 32>}, {pipeline_mode = #tpu.pipeline_mode<synchronous>, transform_indices = @transform_2, window_bounds = array<i64: 1, 32>}, {pipeline_mode = #tpu.pipeline_mode<synchronous>, transform_indices = @transform_3, window_bounds = array<i64: 32, 32>}, {pipeline_mode = #tpu.pipeline_mode<synchronous>, transform_indices = @transform_4, window_bounds = array<i64: 1, 32>}, {pipeline_mode = #tpu.pipeline_mode<synchronous>, transform_indices = @transform_5, window_bounds = array<i64: 32, 128>}, {pipeline_mode = #tpu.pipeline_mode<synchronous>, transform_indices = @transform_6, window_bounds = array<i64: 1, 128>}, {transform_indices = @transform_7, window_bounds = array<i64: 2, 128>}]} {
    %c0 = arith.constant 0 : index
    %c0_0 = arith.constant 0 : index
    %c0_1 = arith.constant 0 : index
    %0 = vector.load %arg1[%c0, %c0_0, %c0_1] : memref<2x16x16xbf16, #tpu.memory_space<vmem>>, vector<2x16x16xbf16>
    %1 = arith.extf %0 : vector<2x16x16xbf16> to vector<2x16x16xf32>
    %cst = arith.constant dense<0.000000e+00> : vector<2x16xf32>
    %2 = vector.multi_reduction <add>, %1, %cst [2] : vector<2x16x16xf32> to vector<2x16xf32>
    %3 = vector.shape_cast %2 : vector<2x16xf32> to vector<2x16x1xf32>
    %cst_2 = arith.constant dense<0.000000e+00> : vector<2x16xf32>
    %4 = vector.multi_reduction <add>, %1, %cst_2 [1] : vector<2x16x16xf32> to vector<2x16xf32>
    %5 = vector.shape_cast %4 : vector<2x16xf32> to vector<2x1x16xf32>
    %cst_3 = arith.constant 1.000000e+00 : f32
    %6 = vector.broadcast %cst_3 : f32 to vector<2x16x1xf32>
    %7 = arith.maximumf %3, %6 : vector<2x16x1xf32>
    %8 = math.rsqrt %7 : vector<2x16x1xf32>
    %cst_4 = arith.constant 1.000000e+00 : f32
    %9 = vector.broadcast %cst_4 : f32 to vector<2x1x16xf32>
    %10 = arith.maximumf %5, %9 : vector<2x1x16xf32>
    %11 = math.rsqrt %10 : vector<2x1x16xf32>
    %12 = vector.broadcast %11 : vector<2x1x16xf32> to vector<2x16x16xf32>
    %13 = arith.mulf %1, %12 : vector<2x16x16xf32>
    "tpu.trace_start"() <{level = 10 : i32, message = "gds,gsk->gdk"}> : () -> ()
    %cst_5 = arith.constant dense<0.000000e+00> : vector<2x16x1xf32>
    %14 = tpu.matmul %13, %3, %cst_5 {dimension_numbers = #tpu.dot_dimension_numbers<[2], [1], [1], [2], [0, 0, 0, 1, 1, 2], [0], [0]>} : vector<2x16x16xf32>, vector<2x16x1xf32>, vector<2x16x1xf32> -> vector<2x16x1xf32>
    "tpu.trace_stop"() : () -> ()
    %15 = arith.mulf %8, %14 : vector<2x16x1xf32>
    %c0_6 = arith.constant 0 : index
    %c0_7 = arith.constant 0 : index
    %16 = vector.load %arg2[%c0_6, %c0_7] : memref<1x32xf32, #tpu.memory_space<vmem>>, vector<1x32xf32>
    %17 = vector.shape_cast %16 : vector<1x32xf32> to vector<1x1x32xf32>
    %18 = vector.broadcast %15 : vector<2x16x1xf32> to vector<2x16x32xf32>
    %19 = vector.broadcast %17 : vector<1x1x32xf32> to vector<2x16x32xf32>
    %20 = arith.mulf %18, %19 : vector<2x16x32xf32>
    %c0_8 = arith.constant 0 : index
    %c0_9 = arith.constant 0 : index
    %21 = vector.load %arg3[%c0_8, %c0_9] : memref<1x32xf32, #tpu.memory_space<vmem>>, vector<1x32xf32>
    %22 = vector.shape_cast %21 : vector<1x32xf32> to vector<1x1x32xf32>
    %23 = vector.broadcast %22 : vector<1x1x32xf32> to vector<2x16x32xf32>
    %24 = arith.addf %20, %23 : vector<2x16x32xf32>
    %cst_10 = arith.constant 0.000000e+00 : f32
    %25 = vector.broadcast %cst_10 : f32 to vector<2x16x32xf32>
    %26 = arith.maximumf %24, %25 : vector<2x16x32xf32>
    "tpu.trace_start"() <{level = 10 : i32, message = "gds,gsh->gdh"}> : () -> ()
    %cst_11 = arith.constant dense<0.000000e+00> : vector<2x16x32xf32>
    %27 = tpu.matmul %13, %26, %cst_11 {dimension_numbers = #tpu.dot_dimension_numbers<[2], [1], [1], [2], [0, 0, 0, 1, 1, 2], [0], [0]>} : vector<2x16x16xf32>, vector<2x16x32xf32>, vector<2x16x32xf32> -> vector<2x16x32xf32>
    "tpu.trace_stop"() : () -> ()
    %28 = vector.broadcast %8 : vector<2x16x1xf32> to vector<2x16x32xf32>
    %29 = arith.mulf %28, %27 : vector<2x16x32xf32>
    %30 = vector.shape_cast %29 : vector<2x16x32xf32> to vector<32x32xf32>
    %c0_12 = arith.constant 0 : index
    %c0_13 = arith.constant 0 : index
    %31 = vector.load %arg4[%c0_12, %c0_13] : memref<32x32xf32, #tpu.memory_space<vmem>>, vector<32x32xf32>
    %cst_14 = arith.constant dense<0.000000e+00> : vector<32x32xf32>
    %32 = tpu.matmul %30, %31, %cst_14 {dimension_numbers = #tpu.dot_dimension_numbers<[1], [0], [0], [1], [0, 0, 1, 1], [], []>} : vector<32x32xf32>, vector<32x32xf32>, vector<32x32xf32> -> vector<32x32xf32>
    %c0_15 = arith.constant 0 : index
    %c0_16 = arith.constant 0 : index
    %33 = vector.load %arg5[%c0_15, %c0_16] : memref<1x32xf32, #tpu.memory_space<vmem>>, vector<1x32xf32>
    %34 = vector.broadcast %33 : vector<1x32xf32> to vector<32x32xf32>
    %35 = arith.addf %32, %34 : vector<32x32xf32>
    %cst_17 = arith.constant 0.000000e+00 : f32
    %36 = vector.broadcast %cst_17 : f32 to vector<32x32xf32>
    %37 = arith.maximumf %35, %36 : vector<32x32xf32>
    %38 = vector.shape_cast %37 : vector<32x32xf32> to vector<2x16x32xf32>
    %cst_18 = arith.constant dense<0.000000e+00> : vector<2x32xf32>
    %39 = vector.multi_reduction <add>, %38, %cst_18 [1] : vector<2x16x32xf32> to vector<2x32xf32>
    %cst_19 = arith.constant 1.600000e+01 : f32
    %40 = vector.broadcast %cst_19 : f32 to vector<2x32xf32>
    %41 = arith.divf %39, %40 : vector<2x32xf32>
    %c0_20 = arith.constant 0 : index
    %c0_21 = arith.constant 0 : index
    %42 = vector.load %arg6[%c0_20, %c0_21] : memref<32x128xf32, #tpu.memory_space<vmem>>, vector<32x128xf32>
    %cst_22 = arith.constant dense<0.000000e+00> : vector<2x128xf32>
    %43 = tpu.matmul %41, %42, %cst_22 {dimension_numbers = #tpu.dot_dimension_numbers<[1], [0], [0], [1], [0, 0, 1, 1], [], []>} : vector<2x32xf32>, vector<32x128xf32>, vector<2x128xf32> -> vector<2x128xf32>
    %c0_23 = arith.constant 0 : index
    %c0_24 = arith.constant 0 : index
    %44 = vector.load %arg7[%c0_23, %c0_24] : memref<1x128xf32, #tpu.memory_space<vmem>>, vector<1x128xf32>
    %45 = vector.broadcast %44 : vector<1x128xf32> to vector<2x128xf32>
    %46 = arith.addf %43, %45 : vector<2x128xf32>
    %c0_25 = arith.constant 0 : index
    %c0_26 = arith.constant 0 : index
    %47 = vector.load %arg8[%c0_25, %c0_26] : memref<2x128xf32, #tpu.memory_space<vmem>>, vector<2x128xf32>
    tpu.vector_store %arg8[%c0_25, %c0_26], %46 {strides = array<i32>} : memref<2x128xf32, #tpu.memory_space<vmem>>, vector<2x128xf32>,
    return
  }
  func.func @transform_0(%arg0: i32) -> (i32, i32, i32) {
    %c0_i32 = arith.constant 0 : i32
    %c0_i32_0 = arith.constant 0 : i32
    %c0_i32_1 = arith.constant 0 : i32
    return %arg0, %c0_i32, %c0_i32_0 : i32, i32, i32
  }
  func.func @transform_1(%arg0: i32) -> (i32, i32) {
    %c0_i32 = arith.constant 0 : i32
    %c0_i32_0 = arith.constant 0 : i32
    %c0_i32_1 = arith.constant 0 : i32
    return %c0_i32, %c0_i32_0 : i32, i32
  }
  func.func @transform_2(%arg0: i32) -> (i32, i32) {
    %c0_i32 = arith.constant 0 : i32
    %c0_i32_0 = arith.constant 0 : i32
    %c0_i32_1 = arith.constant 0 : i32
    return %c0_i32, %c0_i32_0 : i32, i32
  }
  func.func @transform_3(%arg0: i32) -> (i32, i32) {
    %c0_i32 = arith.constant 0 : i32
    %c0_i32_0 = arith.constant 0 : i32
    %c0_i32_1 = arith.constant 0 : i32
    return %c0_i32, %c0_i32_0 : i32, i32
  }
  func.func @transform_4(%arg0: i32) -> (i32, i32) {
    %c0_i32 = arith.constant 0 : i32
    %c0_i32_0 = arith.constant 0 : i32
    %c0_i32_1 = arith.constant 0 : i32
    return %c0_i32, %c0_i32_0 : i32, i32
  }
  func.func @transform_5(%arg0: i32) -> (i32, i32) {
    %c0_i32 = arith.constant 0 : i32
    %c0_i32_0 = arith.constant 0 : i32
    %c0_i32_1 = arith.constant 0 : i32
    return %c0_i32, %c0_i32_0 : i32, i32
  }
  func.func @transform_6(%arg0: i32) -> (i32, i32) {
    %c0_i32 = arith.constant 0 : i32
    %c0_i32_0 = arith.constant 0 : i32
    %c0_i32_1 = arith.constant 0 : i32
    return %c0_i32, %c0_i32_0 : i32, i32
  }
  func.func @transform_7(%arg0: i32) -> (i32, i32) {
    %c0_i32 = arith.constant 0 : i32
    %c0_i32_0 = arith.constant 0 : i32
    return %arg0, %c0_i32 : i32, i32
  }
}

</mosaic_0001>

<llo_original>
// kernel: tpu_custom_call.1
$region0: #{tpu_custom_call.1}
  #allocation0 [shape = 'u32[]', space=smem, size = 0x4, offset = 0x4, fixed_abs, tag = 'smem constant byte address 0x4 - core index']
  #allocation1 [shape = 'u32[144,128]{1,0:T(1,128)}', space=vmem, size = 0x12000, scoped, tag = 'internal scratch']
  %s0 = inlined_call_operand.hbm [shape: bf16[2,16,16], index: 0, kind: input, shape index: {}]
  %s1 = inlined_call_operand.vmem [shape: f32[1,32], index: 1, kind: input, shape index: {}]
  %s2 = inlined_call_operand.vmem [shape: f32[1,32], index: 2, kind: input, shape index: {}]
  %s3 = inlined_call_operand.hbm [shape: f32[32,32], index: 3, kind: input, shape index: {}]
  %s4 = inlined_call_operand.vmem [shape: f32[1,32], index: 4, kind: input, shape index: {}]
  %s5 = inlined_call_operand.hbm [shape: f32[32,128], index: 5, kind: input, shape index: {}]
  %s6 = inlined_call_operand.vmem [shape: f32[1,128], index: 6, kind: input, shape index: {}]
  %s7 = inlined_call_operand.hbm [shape: f32[2,128], index: 7, kind: output, shape index: {}]
  %s8 = sld [smem:[#allocation0]]
  $region50: #{tpu_custom_call.1} parent=0
    _
  %s10 = ssub.s32 1, %s8
  %s11 = scalar_select 0, %s10, %s8
  $region1: #{tpu_custom_call.1} parent=0
    #allocation2 [shape = 'u8[8192]{0}', space=vmem, size = 0x2000, scoped, tag = 'input window, operand 0, single buffered']
    #allocation3 [shape = 's32[1]{0}', space=sflag, size = 0x4, scoped, tag = 'scoped memory for tpu_custom_call.1']
    #allocation4 [shape = 's32[1]{0}', space=sflag, size = 0x4, scoped, tag = 'scoped memory for tpu_custom_call.1']
    #allocation5 [shape = 'u8[16384]{0}', space=vmem, size = 0x4000, scoped, tag = 'input window, operand 3, single buffered']
    #allocation6 [shape = 's32[1]{0}', space=sflag, size = 0x4, scoped, tag = 'scoped memory for tpu_custom_call.1']
    #allocation7 [shape = 'u8[16384]{0}', space=vmem, size = 0x4000, scoped, tag = 'input window, operand 5, single buffered']
    #allocation8 [shape = 'u8[1024]{0}', space=vmem, size = 0x400, scoped, tag = 'output window, operand 0, single buffered']
    %12 = vsyncpa [#allocation3], 0
    %13 = vsyncpa [#allocation6], 0
    %14 = vsyncpa [#allocation4], 0
    // Predicated region
    $region2: #{tpu_custom_call.1} parent=1 // pred_check
      _
    $region3: #{tpu_custom_call.1} parent=1 // pred_check_branch
      %16 = sbr.rel (0) target = $region5
    $region4: #{tpu_custom_call.1} parent=1 // pred_region
      %s18 = ssub.s32 256, 256
      %19 = vsyncadd [#allocation3], %s18
      %s20 = sshll.u32 [#allocation2], 4
      %s21 = int_to_ptr.vmem [resolvable:$true] %s20
      %26 = dma.hbm_to_vmem [thread:$0]  %s0, 256, %s21, [#allocation3], 64, 64, 4
    $region5: #{tpu_custom_call.1} parent=1 // pred_fallthru
      _
    // Predicated region
    $region6: #{tpu_custom_call.1} parent=1 // pred_check
      _
    $region7: #{tpu_custom_call.1} parent=1 // pred_check_branch
      %28 = sbr.rel (0) target = $region9
    $region8: #{tpu_custom_call.1} parent=1 // pred_region
      _
    $region9: #{tpu_custom_call.1} parent=1 // pred_fallthru
      _
    // Predicated region
    $region10: #{tpu_custom_call.1} parent=1 // pred_check
      _
    $region11: #{tpu_custom_call.1} parent=1 // pred_check_branch
      %30 = sbr.rel (0) target = $region13
    $region12: #{tpu_custom_call.1} parent=1 // pred_region
      _
    $region13: #{tpu_custom_call.1} parent=1 // pred_fallthru
      _
    // Predicated region
    $region14: #{tpu_custom_call.1} parent=1 // pred_check
      _
    $region15: #{tpu_custom_call.1} parent=1 // pred_check_branch
      %32 = sbr.rel (0) target = $region17
    $region16: #{tpu_custom_call.1} parent=1 // pred_region
      %s34 = ssub.s32 512, 512
      %35 = vsyncadd [#allocation6], %s34
      %s36 = sshll.u32 [#allocation5], 4
      %s37 = int_to_ptr.vmem [resolvable:$true] %s36
      %42 = dma.hbm_to_vmem [thread:$0]  %s3, 512, %s37, [#allocation6], 128, 128, 8
    $region17: #{tpu_custom_call.1} parent=1 // pred_fallthru
      _
    // Predicated region
    $region18: #{tpu_custom_call.1} parent=1 // pred_check
      _
    $region19: #{tpu_custom_call.1} parent=1 // pred_check_branch
      %44 = sbr.rel (0) target = $region21
    $region20: #{tpu_custom_call.1} parent=1 // pred_region
      _
    $region21: #{tpu_custom_call.1} parent=1 // pred_fallthru
      _
    // Predicated region
    $region22: #{tpu_custom_call.1} parent=1 // pred_check
      _
    $region23: #{tpu_custom_call.1} parent=1 // pred_check_branch
      %46 = sbr.rel (0) target = $region25
    $region24: #{tpu_custom_call.1} parent=1 // pred_region
      %s48 = ssub.s32 512, 512
      %49 = vsyncadd [#allocation6], %s48
      %s50 = sshll.u32 [#allocation7], 4
      %s51 = int_to_ptr.vmem [resolvable:$true] %s50
      %56 = dma.hbm_to_vmem [thread:$0]  %s5, 512, %s51, [#allocation6], 128, 128, 8
    $region25: #{tpu_custom_call.1} parent=1 // pred_fallthru
      _
    // Predicated region
    $region26: #{tpu_custom_call.1} parent=1 // pred_check
      _
    $region27: #{tpu_custom_call.1} parent=1 // pred_check_branch
      %58 = sbr.rel (0) target = $region29
    $region28: #{tpu_custom_call.1} parent=1 // pred_region
      _
    $region29: #{tpu_custom_call.1} parent=1 // pred_fallthru
      _
    // Predicated region
    $region30: #{tpu_custom_call.1} parent=1 // pred_check
      _
    $region31: #{tpu_custom_call.1} parent=1 // pred_check_branch
      %60 = sbr.rel (0) target = $region33
    $region32: #{tpu_custom_call.1} parent=1 // pred_region
      %61 = dma.done [#allocation3], 256
    $region33: #{tpu_custom_call.1} parent=1 // pred_fallthru
      _
    // Predicated region
    $region34: #{tpu_custom_call.1} parent=1 // pred_check
      _
    $region35: #{tpu_custom_call.1} parent=1 // pred_check_branch
      %63 = sbr.rel (0) target = $region37
    $region36: #{tpu_custom_call.1} parent=1 // pred_region
      %64 = dma.done [#allocation6], 512
    $region37: #{tpu_custom_call.1} parent=1 // pred_fallthru
      _
    // Predicated region
    $region38: #{tpu_custom_call.1} parent=1 // pred_check
      _
    $region39: #{tpu_custom_call.1} parent=1 // pred_check_branch
      %66 = sbr.rel (0) target = $region41
    $region40: #{tpu_custom_call.1} parent=1 // pred_region
      %67 = dma.done [#allocation6], 512
    $region41: #{tpu_custom_call.1} parent=1 // pred_fallthru
      _
    %v68 = vld [vmem:[#allocation2] sm:$0xf]
    %v69 = vld [vmem:[#allocation2 + $0x4] sm:$0xf]
    %v70 = vld [vmem:[#allocation2 + $0x8] sm:$0xf]
    %v71 = vld [vmem:[#allocation2 + $0xc] sm:$0xf]
    %v72 = vunpack.c.l.bf16 %v68
    %v73 = vunpack.c.l.bf16 %v69
    %v74 = vunpack.c.l.bf16 %v70
    %v75 = vunpack.c.l.bf16 %v71
    %vm76 = vcmask 130048
    %v77 = vsel %vm76, %v72, 0.0
    %78 = vadd.xlane.f32.xlu0 %v77
    %v79 = vpop.xlane.xlu0 %78
    %v80 = vsel %vm76, %v73, 0.0
    %81 = vadd.xlane.f32.xlu0 %v80
    %v82 = vpop.xlane.xlu0 %81
    %v83 = vsel %vm76, %v74, 0.0
    %84 = vadd.xlane.f32.xlu0 %v83
    %v85 = vpop.xlane.xlu0 %84
    %v86 = vsel %vm76, %v75, 0.0
    %87 = vadd.xlane.f32.xlu0 %v86
    %v88 = vpop.xlane.xlu0 %87
    %v89 = vadd.f32 %v77, %v80
    %v90 = vrot.slane %v89, 4
    %v91 = vadd.f32 %v89, %v90
    %v92 = vrot.slane %v91, 2
    %v93 = vadd.f32 %v91, %v92
    %v94 = vrot.slane %v93, 1
    %v95 = vadd.f32 %v93, %v94
    %v96 = vadd.f32 %v83, %v86
    %v97 = vrot.slane %v96, 4
    %v98 = vadd.f32 %v96, %v97
    %v99 = vrot.slane %v98, 2
    %v100 = vadd.f32 %v98, %v99
    %v101 = vrot.slane %v100, 1
    %v102 = vadd.f32 %v100, %v101
    %v103 = vmax.f32 %v79, 1.0
    %v104 = vmax.f32 %v82, 1.0
    %v105 = vmax.f32 %v85, 1.0
    %v106 = vmax.f32 %v88, 1.0
    %v107 = vrsqrt.pop %v103
    %v108 = vrsqrt.pop %v104
    %v109 = vrsqrt.pop %v105
    %v110 = vrsqrt.pop %v106
    %v111 = vmax.f32 %v95, 1.0
    %v112 = vmax.f32 %v102, 1.0
    %v113 = vrsqrt.pop %v111
    %v114 = vrsqrt.pop %v112
    %v115 = vmul.f32 %v72, %v113
    %v116 = vmul.f32 %v73, %v113
    %v117 = vmul.f32 %v74, %v114
    %v118 = vmul.f32 %v75, %v114
    %v120 = vsel %vm76, %v115, 0
    %v123 = vsel %vm76, %v116, 0
    %125 = vmatprep.subr.mxu0 0.0
    %126 = vmatpush1.msra.mxu0 0.0
    %127 = vmatprep.subr.mxu0 0.0
    %128 = vmatpush1.msra.mxu0 0.0
    %129 = vmatprep.subr.mxu0 0.0
    %130 = vmatpush1.msra.mxu0 0.0
    %131 = vmatprep.subr.mxu0 0.0
    %132 = vmatpush1.msra.mxu0 0.0
    %133 = vmatprep.subr.mxu0 0.0
    %134 = vmatpush1.msra.mxu0 0.0
    %135 = vmatprep.subr.mxu0 0.0
    %136 = vmatpush1.msra.mxu0 0.0
    %137 = vmatprep.subr.mxu0 0.0
    %138 = vmatpush1.msra.mxu0 0.0
    %139 = vmatprep.subr.mxu0 0.0
    %140 = vmatpush1.msra.mxu0 0.0
    %141 = vmatprep.subr.mxu0 0.0
    %142 = vmatpush1.msra.mxu0 0.0
    %143 = vmatprep.subr.mxu0 0.0
    %144 = vmatpush1.msra.mxu0 0.0
    %145 = vmatprep.subr.mxu0 0.0
    %146 = vmatpush1.msra.mxu0 0.0
    %147 = vmatprep.subr.mxu0 0.0
    %148 = vmatpush1.msra.mxu0 0.0
    %149 = vmatprep.subr.mxu0 0.0
    %150 = vmatpush1.msra.mxu0 0.0
    %151 = vmatprep.subr.mxu0 0.0
    %152 = vmatpush1.msra.mxu0 0.0
    %153 = vmatprep.subr.mxu0 0.0
    %154 = vmatpush1.msra.mxu0 %v82
    %155 = vmatprep.subr.mxu0 0.0
    %156 = vmatpush1.msra.mxu0 %v79
    %157 = vmatprep.subr.mxu0 0.0
    %158 = vmatpush2.msra.mxu0 0.0
    %159 = vmatprep.subr.mxu0 0.0
    %160 = vmatpush2.msra.mxu0 0.0
    %161 = vmatprep.subr.mxu0 0.0
    %162 = vmatpush2.msra.mxu0 0.0
    %163 = vmatprep.subr.mxu0 0.0
    %164 = vmatpush2.msra.mxu0 0.0
    %165 = vmatprep.subr.mxu0 0.0
    %166 = vmatpush2.msra.mxu0 0.0
    %167 = vmatprep.subr.mxu0 0.0
    %168 = vmatpush2.msra.mxu0 0.0
    %169 = vmatprep.subr.mxu0 0.0
    %170 = vmatpush2.msra.mxu0 0.0
    %171 = vmatprep.subr.mxu0 0.0
    %172 = vmatpush2.msra.mxu0 0.0
    %173 = vmatprep.subr.mxu0 0.0
    %174 = vmatpush2.msra.mxu0 0.0
    %175 = vmatprep.subr.mxu0 0.0
    %176 = vmatpush2.msra.mxu0 0.0
    %177 = vmatprep.subr.mxu0 0.0
    %178 = vmatpush2.msra.mxu0 0.0
    %179 = vmatprep.subr.mxu0 0.0
    %180 = vmatpush2.msra.mxu0 0.0
    %181 = vmatprep.subr.mxu0 0.0
    %182 = vmatpush2.msra.mxu0 0.0
    %183 = vmatprep.subr.mxu0 0.0
    %184 = vmatpush2.msra.mxu0 0.0
    %185 = vmatprep.subr.mxu0 0.0
    %186 = vmatpush2.msra.mxu0 0.0
    %187 = vmatprep.subr.mxu0 0.0
    %188 = vmatpush2.msra.mxu0 0.0
    %189 = vmatprep.mubr.f32.mxu0 0.0
    %190 = vmatmul.mubr.f32.gmra.mxu0 %v120
    %v191 = vpop.f32.mrf.mxu0
    %v192 = vadd.f32 0.0, %v191
    %v193 = vpop.f32.mrf.mxu0
    %194 = vmatprep.mubr.f32.mxu0 0.0
    %195 = vmatmul.mubr.f32.gmra.mxu0 %v123
    %v196 = vpop.f32.mrf.mxu0
    %v197 = vadd.f32 0.0, %v196
    %v198 = vpop.f32.mrf.mxu0
    %199 = vdwg.mxu0
    %v201 = vsel %vm76, %v117, 0
    %v204 = vsel %vm76, %v118, 0
    %206 = vmatprep.subr.mxu0 0.0
    %207 = vmatpush1.msra.mxu0 0.0
    %208 = vmatprep.subr.mxu0 0.0
    %209 = vmatpush1.msra.mxu0 0.0
    %210 = vmatprep.subr.mxu0 0.0
    %211 = vmatpush1.msra.mxu0 0.0
    %212 = vmatprep.subr.mxu0 0.0
    %213 = vmatpush1.msra.mxu0 0.0
    %214 = vmatprep.subr.mxu0 0.0
    %215 = vmatpush1.msra.mxu0 0.0
    %216 = vmatprep.subr.mxu0 0.0
    %217 = vmatpush1.msra.mxu0 0.0
    %218 = vmatprep.subr.mxu0 0.0
    %219 = vmatpush1.msra.mxu0 0.0
    %220 = vmatprep.subr.mxu0 0.0
    %221 = vmatpush1.msra.mxu0 0.0
    %222 = vmatprep.subr.mxu0 0.0
    %223 = vmatpush1.msra.mxu0 0.0
    %224 = vmatprep.subr.mxu0 0.0
    %225 = vmatpush1.msra.mxu0 0.0
    %226 = vmatprep.subr.mxu0 0.0
    %227 = vmatpush1.msra.mxu0 0.0
    %228 = vmatprep.subr.mxu0 0.0
    %229 = vmatpush1.msra.mxu0 0.0
    %230 = vmatprep.subr.mxu0 0.0
    %231 = vmatpush1.msra.mxu0 0.0
    %232 = vmatprep.subr.mxu0 0.0
    %233 = vmatpush1.msra.mxu0 0.0
    %234 = vmatprep.subr.mxu0 0.0
    %235 = vmatpush1.msra.mxu0 %v88
    %236 = vmatprep.subr.mxu0 0.0
    %237 = vmatpush1.msra.mxu0 %v85
    %238 = vmatprep.subr.mxu0 0.0
    %239 = vmatpush2.msra.mxu0 0.0
    %240 = vmatprep.subr.mxu0 0.0
    %241 = vmatpush2.msra.mxu0 0.0
    %242 = vmatprep.subr.mxu0 0.0
    %243 = vmatpush2.msra.mxu0 0.0
    %244 = vmatprep.subr.mxu0 0.0
    %245 = vmatpush2.msra.mxu0 0.0
    %246 = vmatprep.subr.mxu0 0.0
    %247 = vmatpush2.msra.mxu0 0.0
    %248 = vmatprep.subr.mxu0 0.0
    %249 = vmatpush2.msra.mxu0 0.0
    %250 = vmatprep.subr.mxu0 0.0
    %251 = vmatpush2.msra.mxu0 0.0
    %252 = vmatprep.subr.mxu0 0.0
    %253 = vmatpush2.msra.mxu0 0.0
    %254 = vmatprep.subr.mxu0 0.0
    %255 = vmatpush2.msra.mxu0 0.0
    %256 = vmatprep.subr.mxu0 0.0
    %257 = vmatpush2.msra.mxu0 0.0
    %258 = vmatprep.subr.mxu0 0.0
    %259 = vmatpush2.msra.mxu0 0.0
    %260 = vmatprep.subr.mxu0 0.0
    %261 = vmatpush2.msra.mxu0 0.0
    %262 = vmatprep.subr.mxu0 0.0
    %263 = vmatpush2.msra.mxu0 0.0
    %264 = vmatprep.subr.mxu0 0.0
    %265 = vmatpush2.msra.mxu0 0.0
    %266 = vmatprep.subr.mxu0 0.0
    %267 = vmatpush2.msra.mxu0 0.0
    %268 = vmatprep.subr.mxu0 0.0
    %269 = vmatpush2.msra.mxu0 0.0
    %270 = vmatprep.mubr.f32.mxu0 0.0
    %271 = vmatmul.mubr.f32.gmra.mxu0 %v201
    %v272 = vpop.f32.mrf.mxu0
    %v273 = vadd.f32 0.0, %v272
    %v274 = vpop.f32.mrf.mxu0
    %275 = vmatprep.mubr.f32.mxu0 0.0
    %276 = vmatmul.mubr.f32.gmra.mxu0 %v204
    %v277 = vpop.f32.mrf.mxu0
    %v278 = vadd.f32 0.0, %v277
    %v279 = vpop.f32.mrf.mxu0
    %280 = vdwg.mxu0
    %v281 = vmul.f32 %v107, %v192
    %v282 = vmul.f32 %v108, %v197
    %v283 = vmul.f32 %v109, %v273
    %v284 = vmul.f32 %v110, %v278
    %v285 = vld [vmem:[%s1] sm:$0x1]
    %287 = vset.pattern.permute.xlu0 0
    %288 = vperm.xlu0 %287, %v281
    %v289 = vpop.permute.xlu0 %288
    %292 = vset.pattern.permute.xlu0 0
    %293 = vperm.xlu0 %292, %v282
    %v294 = vpop.permute.xlu0 %293
    %297 = vset.pattern.permute.xlu0 0
    %298 = vperm.xlu0 %297, %v283
    %v299 = vpop.permute.xlu0 %298
    %302 = vset.pattern.permute.xlu0 0
    %303 = vperm.xlu0 %302, %v284
    %v304 = vpop.permute.xlu0 %303
    %v307 = vlaneseq
    %v308 = vshrl.u32 %v307, 7
    %v309 = vsub.s32 0, %v308
    %v310 = vrot.slane %v285, %v309
    %v312 = vmul.f32 %v289, %v310
    %v313 = vmul.f32 %v294, %v310
    %v314 = vmul.f32 %v299, %v310
    %v315 = vmul.f32 %v304, %v310
    %v316 = vld [vmem:[%s2] sm:$0x1]
    %v318 = vlaneseq
    %v319 = vshrl.u32 %v318, 7
    %v320 = vsub.s32 0, %v319
    %v321 = vrot.slane %v316, %v320
    %v323 = vadd.f32 %v312, %v321
    %v324 = vadd.f32 %v313, %v321
    %v325 = vadd.f32 %v314, %v321
    %v326 = vadd.f32 %v315, %v321
    %v327 = vmax.f32 %v323, 0.0
    %v328 = vmax.f32 %v324, 0.0
    %v329 = vmax.f32 %v325, 0.0
    %v330 = vmax.f32 %v326, 0.0
    %331 = vmatprep.subr.mxu0 0.0
    %332 = vmatpush1.msra.mxu0 0.0
    %333 = vmatprep.subr.mxu0 0.0
    %334 = vmatpush1.msra.mxu0 0.0
    %335 = vmatprep.subr.mxu0 0.0
    %336 = vmatpush1.msra.mxu0 0.0
    %337 = vmatprep.subr.mxu0 0.0
    %338 = vmatpush1.msra.mxu0 0.0
    %339 = vmatprep.subr.mxu0 0.0
    %340 = vmatpush1.msra.mxu0 0.0
    %341 = vmatprep.subr.mxu0 0.0
    %342 = vmatpush1.msra.mxu0 0.0
    %343 = vmatprep.subr.mxu0 0.0
    %344 = vmatpush1.msra.mxu0 0.0
    %345 = vmatprep.subr.mxu0 0.0
    %346 = vmatpush1.msra.mxu0 0.0
    %347 = vmatprep.subr.mxu0 0.0
    %348 = vmatpush1.msra.mxu0 0.0
    %349 = vmatprep.subr.mxu0 0.0
    %350 = vmatpush1.msra.mxu0 0.0
    %351 = vmatprep.subr.mxu0 0.0
    %352 = vmatpush1.msra.mxu0 0.0
    %353 = vmatprep.subr.mxu0 0.0
    %354 = vmatpush1.msra.mxu0 0.0
    %355 = vmatprep.subr.mxu0 0.0
    %356 = vmatpush1.msra.mxu0 0.0
    %357 = vmatprep.subr.mxu0 0.0
    %358 = vmatpush1.msra.mxu0 0.0
    %359 = vmatprep.subr.mxu0 0.0
    %360 = vmatpush1.msra.mxu0 %v328
    %361 = vmatprep.subr.mxu0 0.0
    %362 = vmatpush1.msra.mxu0 %v327
    %363 = vmatprep.subr.mxu0 0.0
    %364 = vmatpush2.msra.mxu0 0.0
    %365 = vmatprep.subr.mxu0 0.0
    %366 = vmatpush2.msra.mxu0 0.0
    %367 = vmatprep.subr.mxu0 0.0
    %368 = vmatpush2.msra.mxu0 0.0
    %369 = vmatprep.subr.mxu0 0.0
    %370 = vmatpush2.msra.mxu0 0.0
    %371 = vmatprep.subr.mxu0 0.0
    %372 = vmatpush2.msra.mxu0 0.0
    %373 = vmatprep.subr.mxu0 0.0
    %374 = vmatpush2.msra.mxu0 0.0
    %375 = vmatprep.subr.mxu0 0.0
    %376 = vmatpush2.msra.mxu0 0.0
    %377 = vmatprep.subr.mxu0 0.0
    %378 = vmatpush2.msra.mxu0 0.0
    %379 = vmatprep.subr.mxu0 0.0
    %380 = vmatpush2.msra.mxu0 0.0
    %381 = vmatprep.subr.mxu0 0.0
    %382 = vmatpush2.msra.mxu0 0.0
    %383 = vmatprep.subr.mxu0 0.0
    %384 = vmatpush2.msra.mxu0 0.0
    %385 = vmatprep.subr.mxu0 0.0
    %386 = vmatpush2.msra.mxu0 0.0
    %387 = vmatprep.subr.mxu0 0.0
    %388 = vmatpush2.msra.mxu0 0.0
    %389 = vmatprep.subr.mxu0 0.0
    %390 = vmatpush2.msra.mxu0 0.0
    %391 = vmatprep.subr.mxu0 0.0
    %392 = vmatpush2.msra.mxu0 0.0
    %393 = vmatprep.subr.mxu0 0.0
    %394 = vmatpush2.msra.mxu0 0.0
    %395 = vmatprep.mubr.f32.mxu0 0.0
    %396 = vmatmul.mubr.f32.gmra.mxu0 %v120
    %v397 = vpop.f32.mrf.mxu0
    %v398 = vadd.f32 0.0, %v397
    %v399 = vpop.f32.mrf.mxu0
    %400 = vmatprep.mubr.f32.mxu0 0.0
    %401 = vmatmul.mubr.f32.gmra.mxu0 %v123
    %v402 = vpop.f32.mrf.mxu0
    %v403 = vadd.f32 0.0, %v402
    %v404 = vpop.f32.mrf.mxu0
    %405 = vdwg.mxu0
    %406 = vmatprep.subr.mxu0 0.0
    %407 = vmatpush1.msra.mxu0 0.0
    %408 = vmatprep.subr.mxu0 0.0
    %409 = vmatpush1.msra.mxu0 0.0
    %410 = vmatprep.subr.mxu0 0.0
    %411 = vmatpush1.msra.mxu0 0.0
    %412 = vmatprep.subr.mxu0 0.0
    %413 = vmatpush1.msra.mxu0 0.0
    %414 = vmatprep.subr.mxu0 0.0
    %415 = vmatpush1.msra.mxu0 0.0
    %416 = vmatprep.subr.mxu0 0.0
    %417 = vmatpush1.msra.mxu0 0.0
    %418 = vmatprep.subr.mxu0 0.0
    %419 = vmatpush1.msra.mxu0 0.0
    %420 = vmatprep.subr.mxu0 0.0
    %421 = vmatpush1.msra.mxu0 0.0
    %422 = vmatprep.subr.mxu0 0.0
    %423 = vmatpush1.msra.mxu0 0.0
    %424 = vmatprep.subr.mxu0 0.0
    %425 = vmatpush1.msra.mxu0 0.0
    %426 = vmatprep.subr.mxu0 0.0
    %427 = vmatpush1.msra.mxu0 0.0
    %428 = vmatprep.subr.mxu0 0.0
    %429 = vmatpush1.msra.mxu0 0.0
    %430 = vmatprep.subr.mxu0 0.0
    %431 = vmatpush1.msra.mxu0 0.0
    %432 = vmatprep.subr.mxu0 0.0
    %433 = vmatpush1.msra.mxu0 0.0
    %434 = vmatprep.subr.mxu0 0.0
    %435 = vmatpush1.msra.mxu0 %v330
    %436 = vmatprep.subr.mxu0 0.0
    %437 = vmatpush1.msra.mxu0 %v329
    %438 = vmatprep.subr.mxu0 0.0
    %439 = vmatpush2.msra.mxu0 0.0
    %440 = vmatprep.subr.mxu0 0.0
    %441 = vmatpush2.msra.mxu0 0.0
    %442 = vmatprep.subr.mxu0 0.0
    %443 = vmatpush2.msra.mxu0 0.0
    %444 = vmatprep.subr.mxu0 0.0
    %445 = vmatpush2.msra.mxu0 0.0
    %446 = vmatprep.subr.mxu0 0.0
    %447 = vmatpush2.msra.mxu0 0.0
    %448 = vmatprep.subr.mxu0 0.0
    %449 = vmatpush2.msra.mxu0 0.0
    %450 = vmatprep.subr.mxu0 0.0
    %451 = vmatpush2.msra.mxu0 0.0
    %452 = vmatprep.subr.mxu0 0.0
    %453 = vmatpush2.msra.mxu0 0.0
    %454 = vmatprep.subr.mxu0 0.0
    %455 = vmatpush2.msra.mxu0 0.0
    %456 = vmatprep.subr.mxu0 0.0
    %457 = vmatpush2.msra.mxu0 0.0
    %458 = vmatprep.subr.mxu0 0.0
    %459 = vmatpush2.msra.mxu0 0.0
    %460 = vmatprep.subr.mxu0 0.0
    %461 = vmatpush2.msra.mxu0 0.0
    %462 = vmatprep.subr.mxu0 0.0
    %463 = vmatpush2.msra.mxu0 0.0
    %464 = vmatprep.subr.mxu0 0.0
    %465 = vmatpush2.msra.mxu0 0.0
    %466 = vmatprep.subr.mxu0 0.0
    %467 = vmatpush2.msra.mxu0 0.0
    %468 = vmatprep.subr.mxu0 0.0
    %469 = vmatpush2.msra.mxu0 0.0
    %470 = vmatprep.mubr.f32.mxu0 0.0
    %471 = vmatmul.mubr.f32.gmra.mxu0 %v201
    %v472 = vpop.f32.mrf.mxu0
    %v473 = vadd.f32 0.0, %v472
    %v474 = vpop.f32.mrf.mxu0
    %475 = vmatprep.mubr.f32.mxu0 0.0
    %476 = vmatmul.mubr.f32.gmra.mxu0 %v204
    %v477 = vpop.f32.mrf.mxu0
    %v478 = vadd.f32 0.0, %v477
    %v479 = vpop.f32.mrf.mxu0
    %480 = vdwg.mxu0
    %v481 = vmul.f32 %v107, %v398
    %v482 = vmul.f32 %v108, %v403
    %v483 = vmul.f32 %v109, %v473
    %v484 = vmul.f32 %v110, %v478
    %v485 = vld [vmem:[#allocation5] sm:$0xff]
    %v486 = vld [vmem:[#allocation5 + $0x8] sm:$0xff]
    %v487 = vld [vmem:[#allocation5 + $0x10] sm:$0xff]
    %v488 = vld [vmem:[#allocation5 + $0x18] sm:$0xff]
    %v489 = vld [vmem:[%s4] sm:$0x1]
    %v491 = vlaneseq
    %v492 = vshrl.u32 %v491, 7
    %v493 = vsub.s32 0, %v492
    %v494 = vrot.slane %v489, %v493
    %vm496 = vcmask 261120
    %v498 = vsel %vm496, %v481, 0
    %v501 = vsel %vm496, %v482, 0
    %v504 = vsel %vm496, %v483, 0
    %v507 = vsel %vm496, %v484, 0
    %509 = vmatprep.subr.mxu0 0.0
    %510 = vmatpush1.msra.mxu0 0.0
    %511 = vmatprep.subr.mxu0 0.0
    %512 = vmatpush1.msra.mxu0 0.0
    %513 = vmatprep.subr.mxu0 0.0
    %514 = vmatpush1.msra.mxu0 0.0
    %515 = vmatprep.subr.mxu0 0.0
    %516 = vmatpush1.msra.mxu0 0.0
    %517 = vmatprep.subr.mxu0 0.0
    %518 = vmatpush1.msra.mxu0 0.0
    %519 = vmatprep.subr.mxu0 0.0
    %520 = vmatpush1.msra.mxu0 0.0
    %521 = vmatprep.subr.mxu0 0.0
    %522 = vmatpush1.msra.mxu0 0.0
    %523 = vmatprep.subr.mxu0 0.0
    %524 = vmatpush1.msra.mxu0 0.0
    %525 = vmatprep.subr.mxu0 0.0
    %526 = vmatpush1.msra.mxu0 0.0
    %527 = vmatprep.subr.mxu0 0.0
    %528 = vmatpush1.msra.mxu0 0.0
    %529 = vmatprep.subr.mxu0 0.0
    %530 = vmatpush1.msra.mxu0 0.0
    %531 = vmatprep.subr.mxu0 0.0
    %532 = vmatpush1.msra.mxu0 0.0
    %533 = vmatprep.subr.mxu0 0.0
    %534 = vmatpush1.msra.mxu0 %v488
    %535 = vmatprep.subr.mxu0 0.0
    %536 = vmatpush1.msra.mxu0 %v487
    %537 = vmatprep.subr.mxu0 0.0
    %538 = vmatpush1.msra.mxu0 %v486
    %539 = vmatprep.subr.mxu0 0.0
    %540 = vmatpush1.msra.mxu0 %v485
    %541 = vmatprep.subr.mxu0 0.0
    %542 = vmatpush2.msra.mxu0 0.0
    %543 = vmatprep.subr.mxu0 0.0
    %544 = vmatpush2.msra.mxu0 0.0
    %545 = vmatprep.subr.mxu0 0.0
    %546 = vmatpush2.msra.mxu0 0.0
    %547 = vmatprep.subr.mxu0 0.0
    %548 = vmatpush2.msra.mxu0 0.0
    %549 = vmatprep.subr.mxu0 0.0
    %550 = vmatpush2.msra.mxu0 0.0
    %551 = vmatprep.subr.mxu0 0.0
    %552 = vmatpush2.msra.mxu0 0.0
    %553 = vmatprep.subr.mxu0 0.0
    %554 = vmatpush2.msra.mxu0 0.0
    %555 = vmatprep.subr.mxu0 0.0
    %556 = vmatpush2.msra.mxu0 0.0
    %557 = vmatprep.subr.mxu0 0.0
    %558 = vmatpush2.msra.mxu0 0.0
    %559 = vmatprep.subr.mxu0 0.0
    %560 = vmatpush2.msra.mxu0 0.0
    %561 = vmatprep.subr.mxu0 0.0
    %562 = vmatpush2.msra.mxu0 0.0
    %563 = vmatprep.subr.mxu0 0.0
    %564 = vmatpush2.msra.mxu0 0.0
    %565 = vmatprep.subr.mxu0 0.0
    %566 = vmatpush2.msra.mxu0 0.0
    %567 = vmatprep.subr.mxu0 0.0
    %568 = vmatpush2.msra.mxu0 0.0
    %569 = vmatprep.subr.mxu0 0.0
    %570 = vmatpush2.msra.mxu0 0.0
    %571 = vmatprep.subr.mxu0 0.0
    %572 = vmatpush2.msra.mxu0 0.0
    %573 = vmatprep.mubr.f32.mxu0 0.0
    %574 = vmatmul.mubr.f32.gmra.mxu0 %v498
    %v575 = vpop.f32.mrf.mxu0
    %v576 = vadd.f32 %v494, %v575
    %v577 = vpop.f32.mrf.mxu0
    %578 = vmatprep.mubr.f32.mxu0 0.0
    %579 = vmatmul.mubr.f32.gmra.mxu0 %v501
    %v580 = vpop.f32.mrf.mxu0
    %v581 = vadd.f32 %v494, %v580
    %v582 = vpop.f32.mrf.mxu0
    %583 = vmatprep.mubr.f32.mxu0 0.0
    %584 = vmatmul.mubr.f32.gmra.mxu0 %v504
    %v585 = vpop.f32.mrf.mxu0
    %v586 = vadd.f32 %v494, %v585
    %v587 = vpop.f32.mrf.mxu0
    %588 = vmatprep.mubr.f32.mxu0 0.0
    %589 = vmatmul.mubr.f32.gmra.mxu0 %v507
    %v590 = vpop.f32.mrf.mxu0
    %v591 = vadd.f32 %v494, %v590
    %v592 = vpop.f32.mrf.mxu0
    %593 = vdwg.mxu0
    %v594 = vmax.f32 %v576, 0.0
    %v595 = vmax.f32 %v581, 0.0
    %v596 = vmax.f32 %v586, 0.0
    %v597 = vmax.f32 %v591, 0.0
    %v598 = vsel %vm496, %v594, 0.0
    %v599 = vsel %vm496, %v595, 0.0
    %v600 = vadd.f32 %v598, %v599
    %v601 = vrot.slane %v600, 4
    %v602 = vadd.f32 %v600, %v601
    %v603 = vrot.slane %v602, 2
    %v604 = vadd.f32 %v602, %v603
    %v605 = vrot.slane %v604, 1
    %v606 = vadd.f32 %v604, %v605
    %v607 = vsel %vm496, %v596, 0.0
    %v608 = vsel %vm496, %v597, 0.0
    %v609 = vadd.f32 %v607, %v608
    %v610 = vrot.slane %v609, 4
    %v611 = vadd.f32 %v609, %v610
    %v612 = vrot.slane %v611, 2
    %v613 = vadd.f32 %v611, %v612
    %v614 = vrot.slane %v613, 1
    %v615 = vadd.f32 %v613, %v614
    %v616 = vrcp.pop 16.0
    %v617 = vmul.f32 %v606, %v616
    %v618 = vmul.f32 %v615, %v616
    %v619 = vld [vmem:[#allocation7] sm:$0xff]
    %v620 = vld [vmem:[#allocation7 + $0x8] sm:$0xff]
    %v621 = vld [vmem:[#allocation7 + $0x10] sm:$0xff]
    %v622 = vld [vmem:[#allocation7 + $0x18] sm:$0xff]
    %v623 = vld [vmem:[%s6] sm:$0x1]
    %v625 = vlaneseq
    %v626 = vshrl.u32 %v625, 7
    %v627 = vsub.s32 0, %v626
    %v628 = vrot.slane %v623, %v627
    %vm632 = vcmask 1041409
    %v633 = vsel %vm632, %v618, %v617
    %v634 = vsel %vm496, %v633, 0
    %636 = vmatprep.subr.mxu0 0.0
    %637 = vmatpush1.msra.mxu0 0.0
    %638 = vmatprep.subr.mxu0 0.0
    %639 = vmatpush1.msra.mxu0 0.0
    %640 = vmatprep.subr.mxu0 0.0
    %641 = vmatpush1.msra.mxu0 0.0
    %642 = vmatprep.subr.mxu0 0.0
    %643 = vmatpush1.msra.mxu0 0.0
    %644 = vmatprep.subr.mxu0 0.0
    %645 = vmatpush1.msra.mxu0 0.0
    %646 = vmatprep.subr.mxu0 0.0
    %647 = vmatpush1.msra.mxu0 0.0
    %648 = vmatprep.subr.mxu0 0.0
    %649 = vmatpush1.msra.mxu0 0.0
    %650 = vmatprep.subr.mxu0 0.0
    %651 = vmatpush1.msra.mxu0 0.0
    %652 = vmatprep.subr.mxu0 0.0
    %653 = vmatpush1.msra.mxu0 0.0
    %654 = vmatprep.subr.mxu0 0.0
    %655 = vmatpush1.msra.mxu0 0.0
    %656 = vmatprep.subr.mxu0 0.0
    %657 = vmatpush1.msra.mxu0 0.0
    %658 = vmatprep.subr.mxu0 0.0
    %659 = vmatpush1.msra.mxu0 0.0
    %660 = vmatprep.subr.mxu0 0.0
    %661 = vmatpush1.msra.mxu0 %v622
    %662 = vmatprep.subr.mxu0 0.0
    %663 = vmatpush1.msra.mxu0 %v621
    %664 = vmatprep.subr.mxu0 0.0
    %665 = vmatpush1.msra.mxu0 %v620
    %666 = vmatprep.subr.mxu0 0.0
    %667 = vmatpush1.msra.mxu0 %v619
    %668 = vmatprep.subr.mxu0 0.0
    %669 = vmatpush2.msra.mxu0 0.0
    %670 = vmatprep.subr.mxu0 0.0
    %671 = vmatpush2.msra.mxu0 0.0
    %672 = vmatprep.subr.mxu0 0.0
    %673 = vmatpush2.msra.mxu0 0.0
    %674 = vmatprep.subr.mxu0 0.0
    %675 = vmatpush2.msra.mxu0 0.0
    %676 = vmatprep.subr.mxu0 0.0
    %677 = vmatpush2.msra.mxu0 0.0
    %678 = vmatprep.subr.mxu0 0.0
    %679 = vmatpush2.msra.mxu0 0.0
    %680 = vmatprep.subr.mxu0 0.0
    %681 = vmatpush2.msra.mxu0 0.0
    %682 = vmatprep.subr.mxu0 0.0
    %683 = vmatpush2.msra.mxu0 0.0
    %684 = vmatprep.subr.mxu0 0.0
    %685 = vmatpush2.msra.mxu0 0.0
    %686 = vmatprep.subr.mxu0 0.0
    %687 = vmatpush2.msra.mxu0 0.0
    %688 = vmatprep.subr.mxu0 0.0
    %689 = vmatpush2.msra.mxu0 0.0
    %690 = vmatprep.subr.mxu0 0.0
    %691 = vmatpush2.msra.mxu0 0.0
    %692 = vmatprep.subr.mxu0 0.0
    %693 = vmatpush2.msra.mxu0 0.0
    %694 = vmatprep.subr.mxu0 0.0
    %695 = vmatpush2.msra.mxu0 0.0
    %696 = vmatprep.subr.mxu0 0.0
    %697 = vmatpush2.msra.mxu0 0.0
    %698 = vmatprep.subr.mxu0 0.0
    %699 = vmatpush2.msra.mxu0 0.0
    %700 = vmatprep.mubr.f32.mxu0 0.0
    %701 = vmatmul.mubr.f32.gmra.mxu0 %v634
    %v702 = vpop.f32.mrf.mxu0
    %v703 = vadd.f32 %v628, %v702
    %v704 = vpop.f32.mrf.mxu0
    %705 = vdwg.mxu0
    %706 = vst [vmem:[#allocation8] sm:$0x3] %v703
    // Predicated region
    $region42: #{tpu_custom_call.1} parent=1 // pred_check
      _
    $region43: #{tpu_custom_call.1} parent=1 // pred_check_branch
      %708 = sbr.rel (0) target = $region45
    $region44: #{tpu_custom_call.1} parent=1 // pred_region
      %s710 = ssub.s32 32, 32
      %711 = vsyncadd [#allocation4], %s710
      %s713 = sshll.u32 [#allocation8], 4
      %s714 = int_to_ptr.vmem [resolvable:$true] %s713
      %716 = dma.vmem_to_hbm [thread:$0]  %s714, 32, %s7, [#allocation4]
    $region45: #{tpu_custom_call.1} parent=1 // pred_fallthru
      _
    // Predicated region
    $region46: #{tpu_custom_call.1} parent=1 // pred_check
      _
    $region47: #{tpu_custom_call.1} parent=1 // pred_check_branch
      %718 = sbr.rel (0) target = $region49
    $region48: #{tpu_custom_call.1} parent=1 // pred_region
      %719 = dma.done [#allocation4], 32
    $region49: #{tpu_custom_call.1} parent=1 // pred_fallthru
      _
    %720 = vsyncpa [#allocation3], 1
    %721 = vsyncpa [#allocation6], 1
    %722 = vsyncpa [#allocation4], 1

</llo_original>
